<compile_context>
chip_gen: v7x
topology: tpu7x:2x2x1
jax: 0.10.0
libtpu: 0.0.40
codegen_flags: <defaults>
</compile_context>

<pallas_src>
import functools
import math

import jax
import jax.numpy as jnp
from jax import lax
from jax.experimental import pallas as pl
from jax.experimental.pallas import tpu as pltpu


_MIB = 1024 * 1024


def _sublane_packing(itemsize: int) -> int:
    # sub-32-bit dtypes pack along sublanes: 8 rows/f32, 16/bf16, 32/int8.
    return {4: 8, 2: 16, 1: 32}.get(itemsize, 8)


def _round_up(v: int, m: int) -> int:
    return ((v + m - 1) // m) * m


def _cdiv(a: int, b: int) -> int:
    return -(-a // b)


def _tpu_vmem_info():
    """Return (VMEM budget for tiling/limit, min grid steps for large tensors)."""
    phys = 128 * _MIB
    get_info = getattr(pltpu, "get_tpu_info", None)
    if get_info is not None:
        try:
            phys = int(getattr(get_info(), "vmem_capacity_bytes", phys)) or phys
        except Exception:
            pass
    if phys <= 64 * _MIB:
        # v7x-class: 64 MiB per TensorCore, 2 TCs share HBM.  Budget ~48 MiB
        # and keep >=4 steps (>=2 per core) when the tensor is big enough.
        return 48 * _MIB, 4
    # v5e / v6e: 128 MiB physical, single TensorCore -> >=2 steps suffices.
    return 64 * _MIB, 2


# ---------------------------------------------------------------------------
# LayerNorm kernel (optionally with a fused elementwise fn).
# ---------------------------------------------------------------------------

def _prenorm_ln_kernel(x_ref, g_ref, b_ref, o_ref, *, eps, fused_fn):
    # x_ref: (row_tile, dim)  g_ref/b_ref: (1, dim)  o_ref: (row_tile, dim)
    x = x_ref[...].astype(jnp.float32)
    inv_dim = 1.0 / x.shape[-1]
    # One-pass statistics: sum(x) and sum(x*x) in a single traversal.
    s = jnp.sum(x, axis=-1, keepdims=True)
    ss = jnp.sum(x * x, axis=-1, keepdims=True)
    mean = s * inv_dim
    var = jnp.maximum(ss * inv_dim - mean * mean, 0.0)   # biased var (torch LN)
    inv = lax.rsqrt(var + eps)                            # EUP rsqrt
    y = (x - mean) * inv
    y = y * g_ref[...].astype(jnp.float32) + b_ref[...].astype(jnp.float32)
    if fused_fn is not None:
        y = fused_fn(y)                                   # elementwise only!
    o_ref[...] = y.astype(o_ref.dtype)


def _choose_row_tile(rows, dim, itemsize, sub, budget, min_steps):
    """Row tile: ~4 MiB input block, footprint-aware, sublane-aligned."""
    if rows <= sub:
        return rows                       # full extent -> always layout-legal
    per_row_io = dim * itemsize
    # 2x double-buffered input + 2x double-buffered output + ~3 f32 copies.
    per_row_foot = 4 * per_row_io + 12 * dim
    t_target = max(sub, (4 * _MIB) // max(1, per_row_io))
    t_budget = max(sub, int(0.75 * budget) // max(1, per_row_foot))
    t = min(t_target, t_budget)
    # Keep >= min_steps steps when the tensor is big enough (pipelining; on
    # v7x both TCs get work) — but never shrink blocks below ~1 MiB for it.
    step_cap = _round_up(_cdiv(rows, min_steps), sub)
    if rows > min_steps * sub and step_cap * per_row_io >= _MIB:
        t = min(t, step_cap)
    t = max(sub, (t // sub) * sub)
    return min(t, _round_up(rows, sub))


def _ln_footprint_bytes(row_tile, dim, itemsize):
    io = row_tile * dim * itemsize
    f32 = row_tile * dim * 4
    return 2 * io + 2 * io + 3 * f32 + 4 * dim * 4     # + gamma/beta


def _layernorm_pallas(x, weight, bias, *, eps, fused_fn=None, row_tile=None):
    orig_shape = x.shape
    dim = orig_shape[-1]
    rows = math.prod(orig_shape[:-1]) if len(orig_shape) > 1 else 1

    # Free metadata reshapes — LayerNorm axis is already last, no HBM copy.
    x2 = x.reshape(rows, dim)
    g2 = weight.reshape(1, dim)
    b2 = bias.reshape(1, dim)

    itemsize = jnp.dtype(x.dtype).itemsize
    sub = _sublane_packing(itemsize)
    budget, min_steps = _tpu_vmem_info()
    if row_tile is None:
        row_tile = _choose_row_tile(rows, dim, itemsize, sub, budget, min_steps)

    vmem_limit = min(budget,
                     max(32 * _MIB,
                         _ln_footprint_bytes(row_tile, dim, itemsize) + 2 * _MIB))

    grid = (pl.cdiv(rows, row_tile),)     # partial last block handled by Pallas
    kernel = functools.partial(_prenorm_ln_kernel, eps=eps, fused_fn=fused_fn)

    out = pl.pallas_call(
        kernel,
        out_shape=jax.ShapeDtypeStruct((rows, dim), x.dtype),
        grid_spec=pltpu.PrefetchScalarGridSpec(
            num_scalar_prefetch=0,
            grid=grid,
            in_specs=[
                pl.BlockSpec((row_tile, dim), lambda i: (i, 0)),
                pl.BlockSpec((1, dim), lambda i: (0, 0)),    # gamma, resident
                pl.BlockSpec((1, dim), lambda i: (0, 0)),    # beta, resident
            ],
            out_specs=pl.BlockSpec((row_tile, dim), lambda i: (i, 0)),
        ),
        compiler_params=pltpu.CompilerParams(
            dimension_semantics=("parallel",),
            vmem_limit_bytes=int(vmem_limit),
        ),
    )(x2, g2, b2)
    return out.reshape(orig_shape)


# ---------------------------------------------------------------------------
# Fused LayerNorm -> linear projection kernel (fn is z @ W + b).
# LN is computed once per row tile into VMEM scratch and fed straight to the
# MXU; the normalized activation never touches HBM.
# ---------------------------------------------------------------------------

def _prenorm_linear_kernel(x_ref, g_ref, b_ref, w_ref, pb_ref, o_ref, xn_ref,
                           *, eps):
    j = pl.program_id(1)

    @pl.when(j == 0)                       # LN once per row tile
    def _():
        x = x_ref[...].astype(jnp.float32)
        inv_dim = 1.0 / x.shape[-1]
        s = jnp.sum(x, axis=-1, keepdims=True)
        ss = jnp.sum(x * x, axis=-1, keepdims=True)
        mean = s * inv_dim
        var = jnp.maximum(ss * inv_dim - mean * mean, 0.0)
        inv = lax.rsqrt(var + eps)
        y = (x - mean) * inv
        y = y * g_ref[...].astype(jnp.float32) + b_ref[...].astype(jnp.float32)
        xn_ref[...] = y.astype(xn_ref.dtype)

    acc = jnp.dot(xn_ref[...], w_ref[...], preferred_element_type=jnp.float32)
    acc = acc + pb_ref[...].astype(jnp.float32)
    o_ref[...] = acc.astype(o_ref.dtype)


def _prenorm_linear_pallas(x, ln_w, ln_b, proj_w, proj_b, *, eps):
    orig_shape = x.shape
    dim = orig_shape[-1]
    rows = math.prod(orig_shape[:-1]) if len(orig_shape) > 1 else 1
    n_out = proj_w.shape[-1]
    out_dtype = x.dtype

    x2 = x.reshape(rows, dim)
    g2 = ln_w.reshape(1, dim)
    b2 = ln_b.reshape(1, dim)
    pb2 = (jnp.zeros((1, n_out), jnp.float32) if proj_b is None
           else proj_b.reshape(1, n_out))

    isz = jnp.dtype(x.dtype).itemsize
    w_isz = jnp.dtype(proj_w.dtype).itemsize
    o_isz = jnp.dtype(out_dtype).itemsize
    sub = _sublane_packing(isz)
    budget, min_steps = _tpu_vmem_info()

    # Lane-dense N tile (multiple of 128) unless N is small / ragged.
    tn = min(n_out, 512) if (n_out % 128 == 0) else n_out

    fixed = 2 * dim * tn * w_isz + 4 * dim * 4 + 2 * tn * 4     # W dbl-buf, gamma/beta, pbias
    per_row = (2 * dim * isz          # double-buffered x block
               + dim * isz            # normalized scratch
               + 3 * dim * 4          # f32 LN intermediates
               + 2 * tn * o_isz)      # double-buffered output block
    avail = int(0.75 * budget) - fixed
    if avail < sub * per_row:
        return None                    # caller falls back to the unfused path

    if rows <= sub:
        tm = rows
    else:
        tm_target = max(sub, (4 * _MIB) // max(1, dim * isz))
        tm = min(tm_target, max(sub, avail // per_row))
        step_cap = _round_up(_cdiv(rows, min_steps), sub)
        if rows > min_steps * sub and step_cap * dim * isz >= _MIB:
            tm = min(tm, step_cap)
        tm = max(sub, (tm // sub) * sub)
        tm = min(tm, _round_up(rows, sub))

    vmem_limit = min(budget, max(32 * _MIB, tm * per_row + fixed + 2 * _MIB))

    grid = (pl.cdiv(rows, tm), pl.cdiv(n_out, tn))
    out = pl.pallas_call(
        functools.partial(_prenorm_linear_kernel, eps=eps),
        out_shape=jax.ShapeDtypeStruct((rows, n_out), out_dtype),
        grid_spec=pltpu.PrefetchScalarGridSpec(
            num_scalar_prefetch=0,
            grid=grid,
            in_specs=[
                pl.BlockSpec((tm, dim), lambda i, j: (i, 0)),   # x (resident over j)
                pl.BlockSpec((1, dim), lambda i, j: (0, 0)),    # gamma
                pl.BlockSpec((1, dim), lambda i, j: (0, 0)),    # beta
                pl.BlockSpec((dim, tn), lambda i, j: (0, j)),   # proj weight
                pl.BlockSpec((1, tn), lambda i, j: (0, j)),     # proj bias
            ],
            out_specs=pl.BlockSpec((tm, tn), lambda i, j: (i, j)),
            scratch_shapes=[pltpu.VMEM((tm, dim), x.dtype)],    # normalized tile
        ),
        compiler_params=pltpu.CompilerParams(
            # j axis must stay sequential (scratch reuse across j); rows split
            # across cores.
            dimension_semantics=("parallel", "arbitrary"),
            vmem_limit_bytes=int(vmem_limit),
        ),
    )(x2, g2, b2, proj_w, pb2)
    return out.reshape(orig_shape[:-1] + (n_out,))


# ---------------------------------------------------------------------------
# Module wrapper.
# ---------------------------------------------------------------------------

class PallasPreNorm:
    """Pallas equivalent of torch PreNorm(dim, fn): fn(LayerNorm(dim)(x)).

    fuse_fn=True       : fn must be purely elementwise; it is traced inside the
                         LN kernel (single HBM pass).  Non-elementwise fn here
                         would silently be wrong across block boundaries.
    fuse_linear=(W, b) : fn == (z @ W + b); LN is fused as a producer into a
                         tiled MXU matmul kernel (no HBM round-trip of the
                         normalized activation).  b may be None.
    otherwise          : LN kernel, then fn(normed, **kwargs) as plain JAX.
    """

    def __init__(self, dim, fn, weight=None, bias=None, eps=1e-5,
                 fuse_fn=False, fuse_linear=None, row_tile=None):
        self.dim = dim
        self.fn = fn
        self.eps = float(eps)
        self.fuse_fn = fuse_fn
        self.fuse_linear = fuse_linear
        self.row_tile = row_tile
        # nn.LayerNorm defaults: weight=1, bias=0 (elementwise_affine=True).
        self.weight = (jnp.ones((dim,), jnp.float32) if weight is None
                       else jnp.asarray(weight))
        self.bias = (jnp.zeros((dim,), jnp.float32) if bias is None
                     else jnp.asarray(bias))

    def __call__(self, x, **kwargs):
        if self.fuse_fn:
            assert not kwargs, "kwargs unsupported for a fused elementwise fn"
            return _layernorm_pallas(x, self.weight, self.bias, eps=self.eps,
                                     fused_fn=self.fn, row_tile=self.row_tile)
        if self.fuse_linear is not None:
            assert not kwargs, "kwargs unsupported for a fused linear fn"
            proj_w, proj_b = self.fuse_linear
            out = _prenorm_linear_pallas(x, self.weight, self.bias,
                                         jnp.asarray(proj_w),
                                         None if proj_b is None
                                         else jnp.asarray(proj_b),
                                         eps=self.eps)
            if out is not None:
                return out
            # Footprint fallback: unfused LN kernel + plain matmul.
            normed = _layernorm_pallas(x, self.weight, self.bias, eps=self.eps)
            pw = jnp.asarray(proj_w)
            out = normed @ pw
            return out if proj_b is None else out + jnp.asarray(proj_b)
        normed = _layernorm_pallas(x, self.weight, self.bias, eps=self.eps,
                                   row_tile=self.row_tile)
        # TODO(synk): arbitrary fn submodules (Attention / full FeedForward)
        # have no generic Pallas fusion; they run as plain JAX on the normed
        # output.
        return self.fn(normed, **kwargs)


if __name__ == "__main__":
    key = jax.random.PRNGKey(0)
    B, S, D = 2, 8, 32   # small demo; production dims should be multiples of 128
    kx, kw, kb, kp, kpb = jax.random.split(key, 5)

    x = jax.random.normal(kx, (B, S, D), dtype=jnp.float32)
    weight = 1.0 + 0.1 * jax.random.normal(kw, (D,), dtype=jnp.float32)
    bias = 0.1 * jax.random.normal(kb, (D,), dtype=jnp.float32)

    def ln_ref(v):
        m = jnp.mean(v, axis=-1, keepdims=True)
        var = jnp.mean((v - m) ** 2, axis=-1, keepdims=True)
        return (v - m) / jnp.sqrt(var + 1e-5) * weight + bias

    # Case 1: elementwise fn (GELU), fused into the LayerNorm kernel.
    prenorm_fused = PallasPreNorm(D, jax.nn.gelu, weight=weight, bias=bias,
                                  fuse_fn=True)
    y1 = jax.block_until_ready(prenorm_fused(x))
    y1_ref = jax.nn.gelu(ln_ref(x))
    assert y1.shape == x.shape and y1.dtype == x.dtype
    assert jnp.allclose(y1, y1_ref, atol=1e-4, rtol=1e-4)

    # Case 2: linear fn, fused LN -> MXU matmul (no HBM round trip of normed).
    W = 0.05 * jax.random.normal(kp, (D, D), dtype=jnp.float32)
    pb = 0.02 * jax.random.normal(kpb, (D,), dtype=jnp.float32)
    prenorm_lin = PallasPreNorm(D, lambda z: z @ W + pb, weight=weight,
                                bias=bias, fuse_linear=(W, pb))
    y2 = jax.block_until_ready(prenorm_lin(x))
    y2_ref = ln_ref(x) @ W + pb
    assert y2.shape == x.shape and y2.dtype == x.dtype
    assert jnp.allclose(y2, y2_ref, atol=1e-4, rtol=1e-4)

    # Case 3: arbitrary fn (with kwargs) applied as plain JAX after the kernel.
    fn_generic = lambda z, scale=1.0: (z @ W) * scale
    prenorm_plain = PallasPreNorm(D, fn_generic, weight=weight, bias=bias)
    y3 = jax.block_until_ready(prenorm_plain(x, scale=0.5))
    y3_ref = (ln_ref(x) @ W) * 0.5
    assert y3.shape == x.shape and y3.dtype == x.dtype
    assert jnp.allclose(y3, y3_ref, atol=1e-4, rtol=1e-4)

    print("KERNEL_OK")
</pallas_src>

<mosaic_0001>
module attributes {stable_mosaic.version = 11 : i64} {
  func.func @_prenorm_ln_kernel(%arg0: i32, %arg1: memref<16x32xf32, #tpu.memory_space<vmem>>, %arg2: memref<1x32xf32, #tpu.memory_space<vmem>>, %arg3: memref<1x32xf32, #tpu.memory_space<vmem>>, %arg4: memref<16x32xf32, #tpu.memory_space<vmem>>) attributes {dimension_semantics = [#tpu.dimension_semantics<parallel>], iteration_bounds = array<i64: 1>, scalar_prefetch = 0 : i64, scratch_operands = 0 : i64, tpu.core_type = #tpu.core_type<tc>, window_params = [{transform_indices = @transform_0, window_bounds = array<i64: 16, 32>}, {pipeline_mode = #tpu.pipeline_mode<synchronous>, transform_indices = @transform_1, window_bounds = array<i64: 1, 32>}, {pipeline_mode = #tpu.pipeline_mode<synchronous>, transform_indices = @transform_2, window_bounds = array<i64: 1, 32>}, {transform_indices = @transform_3, window_bounds = array<i64: 16, 32>}]} {
    %c0 = arith.constant 0 : index
    %c0_0 = arith.constant 0 : index
    %0 = vector.load %arg1[%c0, %c0_0] : memref<16x32xf32, #tpu.memory_space<vmem>>, vector<16x32xf32>
    %cst = arith.constant dense<0.000000e+00> : vector<16xf32>
    %1 = vector.multi_reduction <add>, %0, %cst [1] : vector<16x32xf32> to vector<16xf32>
    %2 = vector.shape_cast %1 : vector<16xf32> to vector<16x1xf32>
    %3 = arith.mulf %0, %0 : vector<16x32xf32>
    %cst_1 = arith.constant dense<0.000000e+00> : vector<16xf32>
    %4 = vector.multi_reduction <add>, %3, %cst_1 [1] : vector<16x32xf32> to vector<16xf32>
    %5 = vector.shape_cast %4 : vector<16xf32> to vector<16x1xf32>
    %cst_2 = arith.constant 3.125000e-02 : f32
    %6 = vector.broadcast %cst_2 : f32 to vector<16x1xf32>
    %7 = arith.mulf %2, %6 : vector<16x1xf32>
    %cst_3 = arith.constant 3.125000e-02 : f32
    %8 = vector.broadcast %cst_3 : f32 to vector<16x1xf32>
    %9 = arith.mulf %5, %8 : vector<16x1xf32>
    %10 = arith.mulf %7, %7 : vector<16x1xf32>
    %11 = arith.subf %9, %10 : vector<16x1xf32>
    %cst_4 = arith.constant 0.000000e+00 : f32
    %12 = vector.broadcast %cst_4 : f32 to vector<16x1xf32>
    %13 = arith.maximumf %11, %12 : vector<16x1xf32>
    %cst_5 = arith.constant 9.99999974E-6 : f32
    %14 = vector.broadcast %cst_5 : f32 to vector<16x1xf32>
    %15 = arith.addf %13, %14 : vector<16x1xf32>
    %16 = math.rsqrt %15 : vector<16x1xf32>
    %17 = vector.broadcast %7 : vector<16x1xf32> to vector<16x32xf32>
    %18 = arith.subf %0, %17 : vector<16x32xf32>
    %19 = vector.broadcast %16 : vector<16x1xf32> to vector<16x32xf32>
    %20 = arith.mulf %18, %19 : vector<16x32xf32>
    %c0_6 = arith.constant 0 : index
    %c0_7 = arith.constant 0 : index
    %21 = vector.load %arg2[%c0_6, %c0_7] : memref<1x32xf32, #tpu.memory_space<vmem>>, vector<1x32xf32>
    %22 = vector.broadcast %21 : vector<1x32xf32> to vector<16x32xf32>
    %23 = arith.mulf %20, %22 : vector<16x32xf32>
    %c0_8 = arith.constant 0 : index
    %c0_9 = arith.constant 0 : index
    %24 = vector.load %arg3[%c0_8, %c0_9] : memref<1x32xf32, #tpu.memory_space<vmem>>, vector<1x32xf32>
    %25 = vector.broadcast %24 : vector<1x32xf32> to vector<16x32xf32>
    %26 = arith.addf %23, %25 : vector<16x32xf32>
    %27 = arith.mulf %26, %26 : vector<16x32xf32>
    %28 = arith.mulf %26, %27 : vector<16x32xf32>
    %cst_10 = arith.constant 4.471500e-02 : f32
    %29 = vector.broadcast %cst_10 : f32 to vector<16x32xf32>
    %30 = arith.mulf %29, %28 : vector<16x32xf32>
    %31 = arith.addf %26, %30 : vector<16x32xf32>
    %cst_11 = arith.constant 0.797884583 : f32
    %32 = vector.broadcast %cst_11 : f32 to vector<16x32xf32>
    %33 = arith.mulf %32, %31 : vector<16x32xf32>
    %34 = math.tanh %33 : vector<16x32xf32>
    %cst_12 = arith.constant 1.000000e+00 : f32
    %35 = vector.broadcast %cst_12 : f32 to vector<16x32xf32>
    %36 = arith.addf %35, %34 : vector<16x32xf32>
    %cst_13 = arith.constant 5.000000e-01 : f32
    %37 = vector.broadcast %cst_13 : f32 to vector<16x32xf32>
    %38 = arith.mulf %37, %36 : vector<16x32xf32>
    %39 = arith.mulf %26, %38 : vector<16x32xf32>
    %c0_14 = arith.constant 0 : index
    %c0_15 = arith.constant 0 : index
    %40 = vector.load %arg4[%c0_14, %c0_15] : memref<16x32xf32, #tpu.memory_space<vmem>>, vector<16x32xf32>
    tpu.vector_store %arg4[%c0_14, %c0_15], %39 {strides = array<i32>} : memref<16x32xf32, #tpu.memory_space<vmem>>, vector<16x32xf32>,
    return
  }
  func.func @transform_0(%arg0: i32) -> (i32, i32) {
    %c0_i32 = arith.constant 0 : i32
    %c0_i32_0 = arith.constant 0 : i32
    return %arg0, %c0_i32 : i32, i32
  }
  func.func @transform_1(%arg0: i32) -> (i32, i32) {
    %c0_i32 = arith.constant 0 : i32
    %c0_i32_0 = arith.constant 0 : i32
    %c0_i32_1 = arith.constant 0 : i32
    return %c0_i32, %c0_i32_0 : i32, i32
  }
  func.func @transform_2(%arg0: i32) -> (i32, i32) {
    %c0_i32 = arith.constant 0 : i32
    %c0_i32_0 = arith.constant 0 : i32
    %c0_i32_1 = arith.constant 0 : i32
    return %c0_i32, %c0_i32_0 : i32, i32
  }
  func.func @transform_3(%arg0: i32) -> (i32, i32) {
    %c0_i32 = arith.constant 0 : i32
    %c0_i32_0 = arith.constant 0 : i32
    return %arg0, %c0_i32 : i32, i32
  }
}

</mosaic_0001>

<llo_original>
// kernel: tpu_custom_call.1
$region0: #{tpu_custom_call.1}
  #allocation0 [shape = 'u32[]', space=smem, size = 0x4, offset = 0x4, fixed_abs, tag = 'smem constant byte address 0x4 - core index']
  #allocation1 [shape = 'u32[144,128]{1,0:T(1,128)}', space=vmem, size = 0x12000, scoped, tag = 'internal scratch']
  %s0 = inlined_call_operand.hbm [shape: f32[16,32], index: 0, kind: input, shape index: {}]
  %s1 = inlined_call_operand.vmem [shape: f32[1,32], index: 1, kind: input, shape index: {}]
  %s2 = inlined_call_operand.vmem [shape: f32[1,32], index: 2, kind: input, shape index: {}]
  %s3 = inlined_call_operand.hbm [shape: f32[16,32], index: 3, kind: output, shape index: {}]
  %s4 = sld [smem:[#allocation0]]
  $region26: #{tpu_custom_call.1} parent=0
    _
  %s6 = ssub.s32 1, %s4
  %s7 = scalar_select 0, %s6, %s4
  $region1: #{tpu_custom_call.1} parent=0
    #allocation2 [shape = 'u8[8192]{0}', space=vmem, size = 0x2000, scoped, tag = 'input window, operand 0, single buffered']
    #allocation3 [shape = 's32[1]{0}', space=sflag, size = 0x4, scoped, tag = 'scoped memory for tpu_custom_call.1']
    #allocation4 [shape = 's32[1]{0}', space=sflag, size = 0x4, scoped, tag = 'scoped memory for tpu_custom_call.1']
    #allocation5 [shape = 'u8[8192]{0}', space=vmem, size = 0x2000, scoped, tag = 'output window, operand 0, single buffered']
    %8 = vsyncpa [#allocation3], 0
    %9 = vsyncpa [#allocation4], 0
    // Predicated region
    $region2: #{tpu_custom_call.1} parent=1 // pred_check
      _
    $region3: #{tpu_custom_call.1} parent=1 // pred_check_branch
      %11 = sbr.rel (0) target = $region5
    $region4: #{tpu_custom_call.1} parent=1 // pred_region
      %s13 = ssub.s32 256, 256
      %14 = vsyncadd [#allocation3], %s13
      %s15 = sshll.u32 [#allocation2], 4
      %s16 = int_to_ptr.vmem [resolvable:$true] %s15
      %21 = dma.hbm_to_vmem [thread:$0]  %s0, 256, %s16, [#allocation3], 128, 128, 8
    $region5: #{tpu_custom_call.1} parent=1 // pred_fallthru
      _
    // Predicated region
    $region6: #{tpu_custom_call.1} parent=1 // pred_check
      _
    $region7: #{tpu_custom_call.1} parent=1 // pred_check_branch
      %23 = sbr.rel (0) target = $region9
    $region8: #{tpu_custom_call.1} parent=1 // pred_region
      _
    $region9: #{tpu_custom_call.1} parent=1 // pred_fallthru
      _
    // Predicated region
    $region10: #{tpu_custom_call.1} parent=1 // pred_check
      _
    $region11: #{tpu_custom_call.1} parent=1 // pred_check_branch
      %25 = sbr.rel (0) target = $region13
    $region12: #{tpu_custom_call.1} parent=1 // pred_region
      _
    $region13: #{tpu_custom_call.1} parent=1 // pred_fallthru
      _
    // Predicated region
    $region14: #{tpu_custom_call.1} parent=1 // pred_check
      _
    $region15: #{tpu_custom_call.1} parent=1 // pred_check_branch
      %27 = sbr.rel (0) target = $region17
    $region16: #{tpu_custom_call.1} parent=1 // pred_region
      %28 = dma.done [#allocation3], 256
    $region17: #{tpu_custom_call.1} parent=1 // pred_fallthru
      _
    %v29 = vld [vmem:[#allocation2] sm:$0xff]
    %v30 = vld [vmem:[#allocation2 + $0x8] sm:$0xff]
    %vm31 = vcmask 261120
    %v32 = vsel %vm31, %v29, 0.0
    %33 = vadd.xlane.f32.xlu0 %v32
    %v34 = vpop.xlane.xlu0 %33
    %v35 = vsel %vm31, %v30, 0.0
    %36 = vadd.xlane.f32.xlu0 %v35
    %v37 = vpop.xlane.xlu0 %36
    %v38 = vmul.f32 %v29, %v29
    %v39 = vmul.f32 %v30, %v30
    %v40 = vsel %vm31, %v38, 0.0
    %41 = vadd.xlane.f32.xlu0 %v40
    %v42 = vpop.xlane.xlu0 %41
    %v43 = vsel %vm31, %v39, 0.0
    %44 = vadd.xlane.f32.xlu0 %v43
    %v45 = vpop.xlane.xlu0 %44
    %v46 = vmul.f32 %v34, 0.03125
    %v47 = vmul.f32 %v37, 0.03125
    %v48 = vmul.f32 %v42, 0.03125
    %v49 = vmul.f32 %v45, 0.03125
    %v50 = vmul.f32 %v46, %v46
    %v51 = vmul.f32 %v47, %v47
    %v52 = vsub.f32 %v48, %v50
    %v53 = vsub.f32 %v49, %v51
    %v54 = vmax.f32 %v52, 0.0
    %v55 = vmax.f32 %v53, 0.0
    %v56 = vadd.f32 %v54, 1e-05
    %v57 = vadd.f32 %v55, 1e-05
    %v58 = vrsqrt.pop %v56
    %v59 = vrsqrt.pop %v57
    %v60 = vsub.f32 %v29, %v46
    %v61 = vsub.f32 %v30, %v47
    %v62 = vmul.f32 %v60, %v58
    %v63 = vmul.f32 %v61, %v59
    %v64 = vld [vmem:[%s1] sm:$0x1]
    %v66 = vlaneseq
    %v67 = vshrl.u32 %v66, 7
    %v68 = vsub.s32 0, %v67
    %v69 = vrot.slane %v64, %v68
    %v71 = vmul.f32 %v62, %v69
    %v72 = vmul.f32 %v63, %v69
    %v73 = vld [vmem:[%s2] sm:$0x1]
    %v75 = vlaneseq
    %v76 = vshrl.u32 %v75, 7
    %v77 = vsub.s32 0, %v76
    %v78 = vrot.slane %v73, %v77
    %v80 = vadd.f32 %v71, %v78
    %v81 = vadd.f32 %v72, %v78
    %v82 = vmul.f32 %v80, %v80
    %v83 = vmul.f32 %v81, %v81
    %v84 = vmul.f32 %v80, %v82
    %v85 = vmul.f32 %v81, %v83
    %v86 = vmul.f32 %v84, 0.044715
    %v87 = vmul.f32 %v85, 0.044715
    %v88 = vadd.f32 %v80, %v86
    %v89 = vadd.f32 %v81, %v87
    %v90 = vmul.f32 %v88, 0.7978846
    %v91 = vmul.f32 %v89, 0.7978846
    %v92 = vtanh.pop %v90
    %v93 = vtanh.pop %v91
    %v94 = vadd.f32 %v92, 1.0
    %v95 = vadd.f32 %v93, 1.0
    %v96 = vmul.f32 %v94, 0.5
    %v97 = vmul.f32 %v95, 0.5
    %v98 = vmul.f32 %v80, %v96
    %v99 = vmul.f32 %v81, %v97
    %100 = vst.msk [vmem:[#allocation5] sm:$0xff] %vm31, %v98
    %101 = vst.msk [vmem:[#allocation5 + $0x8] sm:$0xff] %vm31, %v99
    // Predicated region
    $region18: #{tpu_custom_call.1} parent=1 // pred_check
      _
    $region19: #{tpu_custom_call.1} parent=1 // pred_check_branch
      %103 = sbr.rel (0) target = $region21
    $region20: #{tpu_custom_call.1} parent=1 // pred_region
      %s105 = ssub.s32 256, 256
      %106 = vsyncadd [#allocation4], %s105
      %s107 = sshll.u32 [#allocation5], 4
      %s108 = int_to_ptr.vmem [resolvable:$true] %s107
      %113 = dma.vmem_to_hbm [thread:$0]  %s108, 256, %s3, [#allocation4], 128, 128, 8
    $region21: #{tpu_custom_call.1} parent=1 // pred_fallthru
      _
    // Predicated region
    $region22: #{tpu_custom_call.1} parent=1 // pred_check
      _
    $region23: #{tpu_custom_call.1} parent=1 // pred_check_branch
      %115 = sbr.rel (0) target = $region25
    $region24: #{tpu_custom_call.1} parent=1 // pred_region
      %116 = dma.done [#allocation4], 256
    $region25: #{tpu_custom_call.1} parent=1 // pred_fallthru
      _
    %117 = vsyncpa [#allocation3], 1
    %118 = vsyncpa [#allocation4], 1

</llo_original>
